<compile_context>
chip_gen: v6e
topology: v6e:2x2x1
jax: 0.10.0
libtpu: 0.0.40
codegen_flags: <defaults>
</compile_context>

<pallas_src>
import jax
import jax.numpy as jnp
from jax.experimental import pallas as pl
from jax.experimental.pallas import tpu as pltpu


_LANES = 128


def _drop_path_kernel(x_ref, f_ref, o_ref):
    """x_ref/o_ref: (tn, 128) VMEM tiles; f_ref: (tn, 1) per-row keep factor."""
    # Minimal mem-bound body: 1 vld + 1 vmul + 1 vst per vreg.
    o_ref[...] = x_ref[...] * f_ref[...].astype(o_ref.dtype)


def _round_up(n, m):
    return ((n + m - 1) // m) * m


def _sublane_pack(elem_bytes):
    """vreg sublane packing granularity per dtype width."""
    return {1: 32, 2: 16, 4: 8}.get(int(elem_bytes), 8)


def _block_bytes_target():
    """Per-generation data-block target (in + out double-buffered => 4x this)."""
    try:
        kind = jax.devices()[0].device_kind.lower()
    except Exception:
        kind = ""
    if any(v in kind for v in ("v2", "v3", "v4", "v5")):
        return 2 * 1024 * 1024   # v5e: 16 MiB scoped-VMEM default
    return 6 * 1024 * 1024       # v6e / v7x / unknown: 32 MiB scoped default


def drop_path_pallas(x, *, drop_prob=0.0, training=False, scale_by_keep=True,
                     rng_key=None):
    """Pallas DropPath forward. x: (B, ...) — per-sample stochastic depth."""
    if drop_prob == 0.0 or not training:
        return x  # identity path, same as PyTorch

    if rng_key is None:
        # An implicit fixed key would reuse the same keep mask every step and
        # break stochastic-depth training semantics; require an explicit key.
        raise ValueError("drop_path_pallas requires rng_key when training with drop_prob > 0")

    keep_prob = 1.0 - float(drop_prob)
    scale = (1.0 / keep_prob) if (scale_by_keep and keep_prob > 0.0) else 1.0

    orig_shape = x.shape
    B = int(orig_shape[0])
    L = 1
    for d in orig_shape[1:]:
        L *= int(d)
    elem_bytes = jnp.dtype(x.dtype).itemsize

    # Per-sample keep factor (keep * 1/keep_prob), drawn once in the wrapper.
    keep = jax.random.bernoulli(rng_key, p=keep_prob, shape=(B,))
    factor = keep.astype(jnp.float32) * jnp.float32(scale)            # (B,) f32

    # Lane-dense view: flatten each sample, pad trailing dim to a multiple of 128.
    L_pad = _round_up(L, _LANES)
    xf = x.reshape(B, L)
    if L_pad != L:
        xf = jnp.pad(xf, ((0, 0), (0, L_pad - L)))
    rows_per_sample = L_pad // _LANES
    total_rows = B * rows_per_sample
    x2 = xf.reshape(total_rows, _LANES)

    # Per-row factor (tiles may straddle samples, so per-row rather than per-sample).
    f_rows = jnp.repeat(factor, rows_per_sample).reshape(total_rows, 1)

    # cdiv tiling of the row (sublane) axis: block sized per generation and
    # rounded to the dtype packing granularity; Pallas masks the ragged tail.
    pack = _sublane_pack(elem_bytes)
    target_rows = max(pack, _block_bytes_target() // (_LANES * elem_bytes))
    tn = min(_round_up(target_rows, pack), _round_up(total_rows, pack))
    num_blocks = pl.cdiv(total_rows, tn)

    block_bytes = tn * _LANES * elem_bytes
    vmem_limit = min(32 * 1024 * 1024,
                     max(16 * 1024 * 1024, 4 * block_bytes + 4 * tn * 4 + (2 << 20)))

    cost = pl.CostEstimate(
        flops=B * L,
        transcendentals=0,
        bytes_accessed=2 * B * L * elem_bytes + total_rows * 4,
    )

    # TODO(synk): skip the input DMA for fully-dropped blocks (keep == 0) via a
    # scalar-prefetch index_map that re-points at the previously fetched block.
    out2 = pl.pallas_call(
        _drop_path_kernel,
        out_shape=jax.ShapeDtypeStruct((total_rows, _LANES), x.dtype),
        grid=(num_blocks,),
        in_specs=[
            pl.BlockSpec((tn, _LANES), lambda n: (n, 0)),
            pl.BlockSpec((tn, 1), lambda n: (n, 0)),
        ],
        out_specs=pl.BlockSpec((tn, _LANES), lambda n: (n, 0)),
        compiler_params=pltpu.CompilerParams(
            dimension_semantics=("parallel",),
            vmem_limit_bytes=int(vmem_limit),
        ),
        cost_estimate=cost,
    )(x2, f_rows)

    out = out2.reshape(B, L_pad)
    if L_pad != L:
        out = out[:, :L]
    return out.reshape(orig_shape)


def _check_sample(y_b, x_b, keep_prob, rtol=1e-5, atol=1e-5):
    zero_ok = bool(jnp.allclose(y_b.astype(jnp.float32), 0.0, atol=atol))
    scaled_ok = bool(jnp.allclose(
        y_b.astype(jnp.float32), x_b.astype(jnp.float32) / keep_prob,
        rtol=rtol, atol=atol))
    return zero_ok or scaled_ok


if __name__ == "__main__":
    key = jax.random.PRNGKey(0)
    B, N, D = 2, 8, 32
    x = jax.random.normal(key, (B, N, D), dtype=jnp.float32)

    # 1) Eval / drop_prob == 0 path: identity.
    y_eval = jax.block_until_ready(drop_path_pallas(x, drop_prob=0.1, training=False))
    assert jnp.allclose(y_eval, x), "eval path must be identity"

    # 2) Training path: each sample is either 0 or x / keep_prob.
    drop_prob = 0.25
    keep_prob = 1.0 - drop_prob
    y = jax.block_until_ready(
        drop_path_pallas(x, drop_prob=drop_prob, training=True,
                         rng_key=jax.random.PRNGKey(123)))
    for b in range(B):
        assert _check_sample(y[b], x[b], keep_prob), f"sample {b}: invalid drop-path result"

    # 3) Larger flattened length (multiple grid rows spanning samples).
    x2 = jax.random.normal(jax.random.PRNGKey(1), (2, 16, 64), dtype=jnp.float32)
    y2 = jax.block_until_ready(
        drop_path_pallas(x2, drop_prob=drop_prob, training=True,
                         rng_key=jax.random.PRNGKey(7)))
    for b in range(2):
        assert _check_sample(y2[b], x2[b], keep_prob), f"tiled sample {b}: invalid result"

    # 4) Odd trailing size (flattened length not a multiple of 128 -> padded path).
    x3 = jax.random.normal(jax.random.PRNGKey(2), (2, 5, 7), dtype=jnp.float32)
    y3 = jax.block_until_ready(
        drop_path_pallas(x3, drop_prob=drop_prob, training=True,
                         rng_key=jax.random.PRNGKey(11)))
    for b in range(2):
        assert _check_sample(y3[b], x3[b], keep_prob), f"padded sample {b}: invalid result"

    # 5) bf16 input: multiply happens in bf16 (looser tolerance).
    x4 = jax.random.normal(jax.random.PRNGKey(3), (B, N, D), dtype=jnp.bfloat16)
    y4 = jax.block_until_ready(
        drop_path_pallas(x4, drop_prob=drop_prob, training=True,
                         rng_key=jax.random.PRNGKey(21)))
    for b in range(B):
        assert _check_sample(y4[b], x4[b], keep_prob, rtol=2e-2, atol=2e-2), \
            f"bf16 sample {b}: invalid result"

    print("KERNEL_OK")
</pallas_src>

<mosaic_0001>
module attributes {stable_mosaic.version = 11 : i64} {
  func.func @_drop_path_kernel(%arg0: i32, %arg1: memref<8x128xf32, #tpu.memory_space<vmem>>, %arg2: memref<8x1xf32, #tpu.memory_space<vmem>>, %arg3: memref<8x128xf32, #tpu.memory_space<vmem>>) attributes {dimension_semantics = [#tpu.dimension_semantics<parallel>], iteration_bounds = array<i64: 1>, scalar_prefetch = 0 : i64, scratch_operands = 0 : i64, tpu.core_type = #tpu.core_type<tc>, window_params = [{transform_indices = @transform_0, window_bounds = array<i64: 8, 128>}, {transform_indices = @transform_1, window_bounds = array<i64: 8, 1>}, {transform_indices = @transform_2, window_bounds = array<i64: 8, 128>}]} {
    %c0 = arith.constant 0 : index
    %c0_0 = arith.constant 0 : index
    %0 = vector.load %arg1[%c0, %c0_0] : memref<8x128xf32, #tpu.memory_space<vmem>>, vector<8x128xf32>
    %c0_1 = arith.constant 0 : index
    %c0_2 = arith.constant 0 : index
    %1 = vector.load %arg2[%c0_1, %c0_2] : memref<8x1xf32, #tpu.memory_space<vmem>>, vector<8x1xf32>
    %2 = vector.broadcast %1 : vector<8x1xf32> to vector<8x128xf32>
    %3 = arith.mulf %0, %2 : vector<8x128xf32>
    %c0_3 = arith.constant 0 : index
    %c0_4 = arith.constant 0 : index
    %4 = vector.load %arg3[%c0_3, %c0_4] : memref<8x128xf32, #tpu.memory_space<vmem>>, vector<8x128xf32>
    tpu.vector_store %arg3[%c0_3, %c0_4], %3 {strides = array<i32>} : memref<8x128xf32, #tpu.memory_space<vmem>>, vector<8x128xf32>,
    return
  }
  func.func @transform_0(%arg0: i32) -> (i32, i32) {
    %c0_i32 = arith.constant 0 : i32
    %c0_i32_0 = arith.constant 0 : i32
    return %arg0, %c0_i32 : i32, i32
  }
  func.func @transform_1(%arg0: i32) -> (i32, i32) {
    %c0_i32 = arith.constant 0 : i32
    %c0_i32_0 = arith.constant 0 : i32
    return %arg0, %c0_i32 : i32, i32
  }
  func.func @transform_2(%arg0: i32) -> (i32, i32) {
    %c0_i32 = arith.constant 0 : i32
    %c0_i32_0 = arith.constant 0 : i32
    return %arg0, %c0_i32 : i32, i32
  }
}

</mosaic_0001>

<llo_original>
// kernel: tpu_custom_call.1
$region0: #{tpu_custom_call.1}
  #allocation0 [shape = 'u32[]', space=smem, size = 0x4, offset = 0x4, fixed_abs, tag = 'smem constant byte address 0x4 - core index']
  #allocation1 [shape = 'u32[144,128]{1,0:T(1,128)}', space=vmem, size = 0x12000, scoped, tag = 'internal scratch']
  %s0 = inlined_call_operand.vmem [shape: f32[4,128], index: 0, kind: input, shape index: {}]
  %s1 = inlined_call_operand.vmem [shape: f32[4,1], index: 1, kind: input, shape index: {}]
  %s2 = inlined_call_operand.hbm [shape: f32[4,128], index: 2, kind: output, shape index: {}]
  %s3 = sld [smem:[#allocation0]]
  $region18: #{tpu_custom_call.1} parent=0
    _
  %s5 = ssub.s32 1, %s3
  %s6 = scalar_select 0, %s5, %s3
  $region1: #{tpu_custom_call.1} parent=0
    #allocation2 [shape = 'u8[4096]{0}', space=vmem, size = 0x1000, scoped, tag = 'output window, operand 0, single buffered']
    #allocation3 [shape = 's32[1]{0}', space=sflag, size = 0x4, scoped, tag = 'scoped memory for tpu_custom_call.1']
    %7 = vsyncpa [#allocation3], 0
    // Predicated region
    $region2: #{tpu_custom_call.1} parent=1 // pred_check
      _
    $region3: #{tpu_custom_call.1} parent=1 // pred_check_branch
      %9 = sbr.rel (0) target = $region5
    $region4: #{tpu_custom_call.1} parent=1 // pred_region
      _
    $region5: #{tpu_custom_call.1} parent=1 // pred_fallthru
      _
    // Predicated region
    $region6: #{tpu_custom_call.1} parent=1 // pred_check
      _
    $region7: #{tpu_custom_call.1} parent=1 // pred_check_branch
      %11 = sbr.rel (0) target = $region9
    $region8: #{tpu_custom_call.1} parent=1 // pred_region
      _
    $region9: #{tpu_custom_call.1} parent=1 // pred_fallthru
      _
    %v12 = vld [vmem:[%s0] sm:$0xff]
    %v13 = vld [vmem:[%s1] sm:$0xff]
    %15 = vset.pattern.permute.xlu0 0
    %16 = vperm.xlu0 %15, %v13
    %v17 = vpop.permute.xlu0 %16
    %v19 = vmul.f32 %v12, %v17
    %20 = vst [vmem:[#allocation2] sm:$0xff] %v19
    // Predicated region
    $region10: #{tpu_custom_call.1} parent=1 // pred_check
      _
    $region11: #{tpu_custom_call.1} parent=1 // pred_check_branch
      %22 = sbr.rel (0) target = $region13
    $region12: #{tpu_custom_call.1} parent=1 // pred_region
      %s24 = ssub.s32 128, 64
      %25 = vsyncadd [#allocation3], %s24
      %s26 = sshll.u32 [#allocation2], 4
      %s27 = int_to_ptr.vmem [resolvable:$true] %s26
      %32 = dma.vmem_to_hbm [thread:$0]  %s27, 64, %s2, [#allocation3], 64, 64, 4
    $region13: #{tpu_custom_call.1} parent=1 // pred_fallthru
      _
    // Predicated region
    $region14: #{tpu_custom_call.1} parent=1 // pred_check
      _
    $region15: #{tpu_custom_call.1} parent=1 // pred_check_branch
      %34 = sbr.rel (0) target = $region17
    $region16: #{tpu_custom_call.1} parent=1 // pred_region
      %35 = dma.done [#allocation3], 128
    $region17: #{tpu_custom_call.1} parent=1 // pred_fallthru
      _
    %36 = vsyncpa [#allocation3], 1

</llo_original>
